<compile_context>
chip_gen: v7x
topology: tpu7x:2x2x1
jax: 0.10.0
libtpu: 0.0.40
codegen_flags: <defaults>
</compile_context>

<pallas_src>
import functools

import jax
import jax.numpy as jnp
from jax.experimental import pallas as pl
from jax.experimental.pallas import tpu as pltpu


# ------------------------------ fused kernel --------------------------------

def _fused_ir_kernel(*refs, stride, read_rows, has_expand, use_shortcut):
    """One (batch, row-strip) tile: expand -> depthwise 3x3 -> project.

    refs layout (in order):
      x_ref (H, W, Cin)                       full-H image, resident across h
      [w_e_ref (Cin, hidden) bf16, b1_ref (1, hidden) f32]    if has_expand
      w_dw_ref (9, hidden) f32, b2_ref (1, hidden) f32
      w_p_ref (hidden, Cout) bf16, b3_ref (1, Cout) f32
      o_ref (th_out, Wout, Cout)
      hbuf  (read_rows + 2, W, hidden) f32 VMEM scratch (row-padded strip)
    """
    it = iter(refs)
    x_ref = next(it)
    if has_expand:
        w_e_ref = next(it)
        b1_ref = next(it)
    w_dw_ref = next(it)
    b2_ref = next(it)
    w_p_ref = next(it)
    b3_ref = next(it)
    o_ref = next(it)
    hbuf = next(it)

    H, W, Cin = x_ref.shape
    hidden = hbuf.shape[2]
    th_out, wout, cout = o_ref.shape

    # ---- row-window bookkeeping (3x3 "same" halo handled in-kernel) --------
    h_idx = pl.program_id(1)
    start = h_idx * th_out * stride - 1           # first virtual padded row
    rs = jnp.clip(start, 0, H - read_rows)        # clamped actual read start
    off = start - rs + 1                          # window offset inside hbuf

    # Halo-only zeroing: rows 0 and read_rows+1 are the top/bottom zero pad.
    # (Interior rows are fully overwritten by stage 1 every step.)
    zrow = jnp.zeros((1, W, hidden), jnp.float32)
    hbuf[0:1, :, :] = zrow
    hbuf[read_rows + 1:read_rows + 2, :, :] = zrow

    # ---- stage 1: expand 1x1 conv + BN + ReLU6 (or passthrough) ------------
    xw = x_ref[pl.ds(rs, read_rows), :, :]                  # (read_rows, W, Cin)
    if has_expand:
        a = jnp.dot(xw.reshape(read_rows * W, Cin).astype(jnp.bfloat16),
                    w_e_ref[...], preferred_element_type=jnp.float32)
        a = jnp.clip(a + b1_ref[...], 0.0, 6.0)
        hbuf[1:read_rows + 1, :, :] = a.reshape(read_rows, W, hidden)
    else:
        hbuf[1:read_rows + 1, :, :] = xw.astype(jnp.float32)

    # ---- stage 2: 3x3 depthwise conv + BN + ReLU6 ---------------------------
    # 3 row-slab loads; per-kx accumulators; column shifts via 2 XLU rolls.
    wdw = w_dw_ref[...]                                     # (9, hidden)
    n_rows = th_out if stride == 1 else (th_out - 1) * stride + 1
    acc_l = jnp.zeros((n_rows, W, hidden), jnp.float32)
    acc_c = jnp.zeros((n_rows, W, hidden), jnp.float32)
    acc_r = jnp.zeros((n_rows, W, hidden), jnp.float32)
    for ky in range(3):
        slab = hbuf[pl.ds(off + ky, n_rows), :, :]          # (n_rows, W, hidden)
        acc_l = acc_l + slab * wdw[ky * 3 + 0]
        acc_c = acc_c + slab * wdw[ky * 3 + 1]
        acc_r = acc_r + slab * wdw[ky * 3 + 2]
    col = jax.lax.broadcasted_iota(jnp.int32, (1, W, hidden), 1)
    lmask = (col >= 1).astype(jnp.float32)                  # zero virtual col -1
    rmask = (col <= W - 2).astype(jnp.float32)              # zero virtual col W
    acc = (acc_c
           + pltpu.roll(acc_l, shift=1, axis=1) * lmask
           + pltpu.roll(acc_r, shift=W - 1, axis=1) * rmask)
    z = jnp.clip(acc + b2_ref[...].reshape(1, 1, hidden), 0.0, 6.0)
    if stride == 1:
        hdw = z
    else:
        hdw = jax.lax.slice(z, (0, 0, 0), (n_rows, W, hidden),
                            (stride, stride, 1))            # (th_out, wout, hidden)

    # ---- stage 3: project 1x1 conv + BN (+ residual) ------------------------
    y = jnp.dot(hdw.reshape(th_out * wout, hidden).astype(jnp.bfloat16),
                w_p_ref[...], preferred_element_type=jnp.float32)
    y = y + b3_ref[...]
    if use_shortcut:
        # Residual strip read from the already-resident x block (no extra DMA).
        res = x_ref[pl.ds(h_idx * th_out, th_out), :, :]
        y = y + res.reshape(th_out * wout, cout).astype(jnp.float32)
    o_ref[...] = y.reshape(th_out, wout, cout).astype(o_ref.dtype)


# --------------------------------- wrapper ----------------------------------

def _fold_bn(bn, eps=1e-5):
    gamma, beta, mean, var = bn
    scale = gamma / jnp.sqrt(var + eps)
    bias = beta - mean * scale
    return scale, bias


def _vmem_capacity_bytes():
    try:
        return int(pltpu.get_tpu_info().vmem_capacity_bytes)
    except Exception:
        return 64 * 1024 * 1024   # conservative fallback (v7x per-core size)


def _pick_row_tile(h_out, h_in, stride, w, cin, cout, hidden, itemsize,
                   vmem_budget, max_rows=None):
    """Largest divisor of h_out whose strip fits the VMEM budget.

    Single full-H strips are allowed (clamped window handles th_in > H there);
    multi-strip tiles require (t-1)*stride+3 <= H for the clamped read window.
    """
    best = 0
    w_out = (w - 1) // stride + 1
    for t in range(1, h_out + 1):
        if h_out % t != 0:
            continue
        t_in = (t - 1) * stride + 3
        if t_in > h_in and t != h_out:
            continue
        if max_rows is not None and t > max_rows:
            continue
        read_rows = min(t_in, h_in)
        est = (2 * h_in * w * cin * itemsize                    # resident x (dbl buf)
               + (read_rows + 2) * w * hidden * 4               # hbuf scratch
               + 2 * t * w_out * cout * itemsize)               # output (dbl buf)
        if est > vmem_budget:
            continue
        best = t
    if best == 0:
        raise ValueError("spatial size too small for 3x3 'same' conv tiling")
    return best


def inverted_residual_nhwc(x, params, *, in_c, out_c, stride, expand_ratio,
                           max_rows_per_tile=None):
    """Fused InvertedResidual forward, NHWC in / NHWC out (no boundary transposes)."""
    N, H, W, C = x.shape
    assert C == in_c and H >= 3 and W >= 3
    hidden = in_c * expand_ratio
    has_expand = expand_ratio != 1
    use_shortcut = (stride == 1 and in_c == out_c)

    Hout = (H - 1) // stride + 1
    Wout = (W - 1) // stride + 1

    # VMEM-budget-driven tiling: whole-H strips whenever they fit.
    vmem_cap = _vmem_capacity_bytes()
    vmem_limit = max(32 * 1024 * 1024, min((vmem_cap * 3) // 4, 100 * 1024 * 1024))
    itemsize = jnp.dtype(x.dtype).itemsize
    th = _pick_row_tile(Hout, H, stride, W, in_c, out_c, hidden, itemsize,
                        vmem_budget=vmem_limit // 2, max_rows=max_rows_per_tile)
    th_in = (th - 1) * stride + 3
    read_rows = min(th_in, H)
    nh = Hout // th

    # Fold BN scales into the conv weights (host side, tiny arrays). MXU
    # operands (1x1 conv weights) go to bf16; depthwise weights stay f32 (VPU).
    if has_expand:
        s1, b1 = _fold_bn(params["bn1"])
        w_e = (params["w_expand"] * s1[None, :]).astype(jnp.bfloat16)
        b1 = b1.reshape(1, hidden).astype(jnp.float32)
    s2, b2 = _fold_bn(params["bn2"])
    w_dw = (params["w_dw"] * s2[None, None, :]).reshape(9, hidden)
    w_dw = w_dw.astype(jnp.float32)
    b2 = b2.reshape(1, hidden).astype(jnp.float32)
    s3, b3 = _fold_bn(params["bn3"])
    w_p = (params["w_proj"] * s3[None, :]).astype(jnp.bfloat16)
    b3 = b3.reshape(1, out_c).astype(jnp.float32)

    args = [x]
    # x is full-H per batch element: index_map ignores h, so Pallas keeps it
    # resident in VMEM across the row-strip axis (re-DMA only when n changes).
    # The residual (shortcut) is read from this same block inside the kernel.
    in_specs = [pl.BlockSpec((pl.Squeezed(), H, W, in_c),
                             lambda n, h: (n, 0, 0, 0))]
    if has_expand:
        args += [w_e, b1]
        in_specs += [pl.BlockSpec((in_c, hidden), lambda n, h: (0, 0)),
                     pl.BlockSpec((1, hidden), lambda n, h: (0, 0))]
    args += [w_dw, b2, w_p, b3]
    in_specs += [pl.BlockSpec((9, hidden), lambda n, h: (0, 0)),
                 pl.BlockSpec((1, hidden), lambda n, h: (0, 0)),
                 pl.BlockSpec((hidden, out_c), lambda n, h: (0, 0)),
                 pl.BlockSpec((1, out_c), lambda n, h: (0, 0))]

    kernel = functools.partial(_fused_ir_kernel, stride=stride,
                               read_rows=read_rows, has_expand=has_expand,
                               use_shortcut=use_shortcut)

    return pl.pallas_call(
        kernel,
        out_shape=jax.ShapeDtypeStruct((N, Hout, Wout, out_c), x.dtype),
        grid=(N, nh),
        in_specs=in_specs,
        out_specs=pl.BlockSpec((pl.Squeezed(), th, Wout, out_c),
                               lambda n, h: (n, h, 0, 0)),
        scratch_shapes=[pltpu.VMEM((read_rows + 2, W, hidden), jnp.float32)],
        compiler_params=pltpu.CompilerParams(
            # batch axis parallel (megacore shards on N, never duplicating the
            # resident full-H x block); row-strip axis sequential.
            dimension_semantics=("parallel", "arbitrary"),
            vmem_limit_bytes=int(vmem_limit)),
    )(*args)


def inverted_residual(x_nchw, params, *, in_c, out_c, stride, expand_ratio,
                      max_rows_per_tile=None):
    """PyTorch-parity wrapper: NCHW in / NCHW out. NHWC callers should use
    inverted_residual_nhwc directly and skip these two transposes."""
    x = jnp.transpose(x_nchw, (0, 2, 3, 1))
    y = inverted_residual_nhwc(x, params, in_c=in_c, out_c=out_c,
                               stride=stride, expand_ratio=expand_ratio,
                               max_rows_per_tile=max_rows_per_tile)
    return jnp.transpose(y, (0, 3, 1, 2))


# ------------------------------ parameters ----------------------------------

def _bn_params(key, c):
    k1, k2, k3, k4 = jax.random.split(key, 4)
    gamma = 1.0 + 0.1 * jax.random.normal(k1, (c,), jnp.float32)
    beta = 0.1 * jax.random.normal(k2, (c,), jnp.float32)
    mean = 0.1 * jax.random.normal(k3, (c,), jnp.float32)
    var = jnp.abs(jax.random.normal(k4, (c,), jnp.float32)) + 0.5
    return gamma, beta, mean, var


def init_params(key, in_c, out_c, expand_ratio):
    hidden = in_c * expand_ratio
    ks = jax.random.split(key, 6)
    params = {}
    if expand_ratio != 1:
        # PyTorch 1x1 conv weight (hidden, in, 1, 1) -> (in, hidden)
        params["w_expand"] = 0.1 * jax.random.normal(ks[0], (in_c, hidden),
                                                     jnp.float32)
        params["bn1"] = _bn_params(ks[1], hidden)
    # PyTorch depthwise weight (hidden, 1, 3, 3) -> (3, 3, hidden)
    params["w_dw"] = 0.1 * jax.random.normal(ks[2], (3, 3, hidden), jnp.float32)
    params["bn2"] = _bn_params(ks[3], hidden)
    # PyTorch projection weight (out, hidden, 1, 1) -> (hidden, out)
    params["w_proj"] = 0.1 * jax.random.normal(ks[4], (hidden, out_c),
                                               jnp.float32)
    params["bn3"] = _bn_params(ks[5], out_c)
    return params


# ------------------------------ pure-JAX ref ---------------------------------

def reference(x_nchw, params, *, in_c, out_c, stride, expand_ratio):
    x = jnp.transpose(x_nchw, (0, 2, 3, 1))
    hidden = in_c * expand_ratio
    h = x
    if expand_ratio != 1:
        s, b = _fold_bn(params["bn1"])
        h = jnp.clip(jnp.einsum("nhwc,cd->nhwd", h, params["w_expand"]) * s + b,
                     0.0, 6.0)
    s, b = _fold_bn(params["bn2"])
    dw = params["w_dw"].reshape(3, 3, 1, hidden)
    h = jax.lax.conv_general_dilated(
        h, dw, (stride, stride), ((1, 1), (1, 1)),
        dimension_numbers=("NHWC", "HWIO", "NHWC"),
        feature_group_count=hidden)
    h = jnp.clip(h * s + b, 0.0, 6.0)
    s, b = _fold_bn(params["bn3"])
    y = jnp.einsum("nhwc,cd->nhwd", h, params["w_proj"]) * s + b
    if stride == 1 and in_c == out_c:
        y = y + x
    return jnp.transpose(y, (0, 3, 1, 2))


# ---------------------------------- main -------------------------------------

if __name__ == "__main__":
    key = jax.random.PRNGKey(0)
    kx, kp, kq = jax.random.split(key, 3)

    # bf16 MXU operands (f32 accumulation) -> compare against the f32 reference
    # at a matching tolerance.
    ATOL = RTOL = 4e-2

    # Config 1: stride=1, in==out, expand=2 -> shortcut + expand path.
    # max_rows_per_tile=4 forces 4 row strips (top / interior / bottom halos).
    IN_C, OUT_C, STRIDE, EXPAND = 8, 8, 1, 2
    N, H, W = 2, 16, 16
    x = jax.random.normal(kx, (N, IN_C, H, W), jnp.float32)
    params = init_params(kp, IN_C, OUT_C, EXPAND)

    out = jax.block_until_ready(
        inverted_residual(x, params, in_c=IN_C, out_c=OUT_C, stride=STRIDE,
                          expand_ratio=EXPAND, max_rows_per_tile=4))
    ref = jax.block_until_ready(
        reference(x, params, in_c=IN_C, out_c=OUT_C, stride=STRIDE,
                  expand_ratio=EXPAND))
    assert out.shape == (N, OUT_C, H, W), out.shape
    assert jnp.allclose(out, ref, atol=ATOL, rtol=RTOL), \
        float(jnp.max(jnp.abs(out - ref)))

    # Config 2: expand_ratio=1 (no expand conv), in != out -> no shortcut,
    # VMEM-budget-driven tiling picks a single full-H strip.
    IN2, OUT2 = 8, 16
    x2 = jax.random.normal(kq, (1, IN2, H, W), jnp.float32)
    params2 = init_params(jax.random.fold_in(kp, 1), IN2, OUT2, 1)
    out2 = jax.block_until_ready(
        inverted_residual(x2, params2, in_c=IN2, out_c=OUT2, stride=1,
                          expand_ratio=1))
    ref2 = jax.block_until_ready(
        reference(x2, params2, in_c=IN2, out_c=OUT2, stride=1, expand_ratio=1))
    assert out2.shape == (1, OUT2, H, W), out2.shape
    assert jnp.allclose(out2, ref2, atol=ATOL, rtol=RTOL), \
        float(jnp.max(jnp.abs(out2 - ref2)))

    print("KERNEL_OK")
</pallas_src>

<mosaic_0001>
module attributes {stable_mosaic.version = 11 : i64} {
  func.func @_fused_ir_kernel(%arg0: i32, %arg1: i32, %arg2: memref<1x16x16x8xf32, #tpu.memory_space<vmem>>, %arg3: memref<8x16xbf16, #tpu.memory_space<vmem>>, %arg4: memref<1x16xf32, #tpu.memory_space<vmem>>, %arg5: memref<9x16xf32, #tpu.memory_space<vmem>>, %arg6: memref<1x16xf32, #tpu.memory_space<vmem>>, %arg7: memref<16x8xbf16, #tpu.memory_space<vmem>>, %arg8: memref<1x8xf32, #tpu.memory_space<vmem>>, %arg9: memref<1x4x16x8xf32, #tpu.memory_space<vmem>>, %arg10: memref<8x16x16xf32, #tpu.memory_space<vmem>>) attributes {dimension_semantics = [#tpu.dimension_semantics<parallel>, #tpu.dimension_semantics<arbitrary>], iteration_bounds = array<i64: 2, 4>, scalar_prefetch = 0 : i64, scratch_operands = 1 : i64, tpu.core_type = #tpu.core_type<tc>, window_params = [{transform_indices = @transform_0, window_bounds = array<i64: 1, 16, 16, 8>}, {pipeline_mode = #tpu.pipeline_mode<synchronous>, transform_indices = @transform_1, window_bounds = array<i64: 8, 16>}, {pipeline_mode = #tpu.pipeline_mode<synchronous>, transform_indices = @transform_2, window_bounds = array<i64: 1, 16>}, {pipeline_mode = #tpu.pipeline_mode<synchronous>, transform_indices = @transform_3, window_bounds = array<i64: 9, 16>}, {pipeline_mode = #tpu.pipeline_mode<synchronous>, transform_indices = @transform_4, window_bounds = array<i64: 1, 16>}, {pipeline_mode = #tpu.pipeline_mode<synchronous>, transform_indices = @transform_5, window_bounds = array<i64: 16, 8>}, {pipeline_mode = #tpu.pipeline_mode<synchronous>, transform_indices = @transform_6, window_bounds = array<i64: 1, 8>}, {transform_indices = @transform_7, window_bounds = array<i64: 1, 4, 16, 8>}]} {
    %c4_i32 = arith.constant 4 : i32
    %0 = arith.muli %arg1, %c4_i32 : i32
    %c1_i32 = arith.constant 1 : i32
    %1 = arith.muli %0, %c1_i32 : i32
    %c1_i32_0 = arith.constant 1 : i32
    %2 = arith.subi %1, %c1_i32_0 : i32
    %c0_i32 = arith.constant 0 : i32
    %c10_i32 = arith.constant 10 : i32
    %3 = arith.maxsi %c0_i32, %2 : i32
    %4 = arith.minsi %c10_i32, %3 : i32
    %5 = arith.subi %2, %4 : i32
    %c1_i32_1 = arith.constant 1 : i32
    %6 = arith.addi %5, %c1_i32_1 : i32
    %cst = arith.constant 0.000000e+00 : f32
    %7 = vector.broadcast %cst : f32 to vector<1x16x16xf32>
    %c0 = arith.constant 0 : index
    %c0_2 = arith.constant 0 : index
    %c0_3 = arith.constant 0 : index
    %8 = vector.load %arg10[%c0, %c0_2, %c0_3] : memref<8x16x16xf32, #tpu.memory_space<vmem>>, vector<1x16x16xf32>
    tpu.vector_store %arg10[%c0, %c0_2, %c0_3], %7 {strides = array<i32>} : memref<8x16x16xf32, #tpu.memory_space<vmem>>, vector<1x16x16xf32>,
    %c7 = arith.constant 7 : index
    %c0_4 = arith.constant 0 : index
    %c0_5 = arith.constant 0 : index
    %9 = vector.load %arg10[%c7, %c0_4, %c0_5] : memref<8x16x16xf32, #tpu.memory_space<vmem>>, vector<1x16x16xf32>
    tpu.vector_store %arg10[%c7, %c0_4, %c0_5], %7 {strides = array<i32>} : memref<8x16x16xf32, #tpu.memory_space<vmem>>, vector<1x16x16xf32>,
    %c0_6 = arith.constant 0 : index
    %10 = arith.index_cast %4 : i32 to index
    %c0_7 = arith.constant 0 : index
    %c0_8 = arith.constant 0 : index
    %11 = vector.load %arg2[%c0_6, %10, %c0_7, %c0_8] : memref<1x16x16x8xf32, #tpu.memory_space<vmem>>, vector<1x6x16x8xf32>
    %12 = vector.shape_cast %11 : vector<1x6x16x8xf32> to vector<6x16x8xf32>
    %13 = vector.shape_cast %12 : vector<6x16x8xf32> to vector<96x8xf32>
    %14 = arith.truncf %13 : vector<96x8xf32> to vector<96x8xbf16>
    %c0_9 = arith.constant 0 : index
    %c0_10 = arith.constant 0 : index
    %15 = vector.load %arg3[%c0_9, %c0_10] : memref<8x16xbf16, #tpu.memory_space<vmem>>, vector<8x16xbf16>
    %cst_11 = arith.constant dense<0.000000e+00> : vector<96x16xf32>
    %16 = tpu.matmul %14, %15, %cst_11 {dimension_numbers = #tpu.dot_dimension_numbers<[1], [0], [0], [1], [0, 0, 1, 1], [], []>} : vector<96x8xbf16>, vector<8x16xbf16>, vector<96x16xf32> -> vector<96x16xf32>
    %c0_12 = arith.constant 0 : index
    %c0_13 = arith.constant 0 : index
    %17 = vector.load %arg4[%c0_12, %c0_13] : memref<1x16xf32, #tpu.memory_space<vmem>>, vector<1x16xf32>
    %18 = vector.broadcast %17 : vector<1x16xf32> to vector<96x16xf32>
    %19 = arith.addf %16, %18 : vector<96x16xf32>
    %cst_14 = arith.constant 0.000000e+00 : f32
    %cst_15 = arith.constant 6.000000e+00 : f32
    %20 = vector.broadcast %cst_14 : f32 to vector<96x16xf32>
    %21 = arith.maximumf %20, %19 : vector<96x16xf32>
    %22 = vector.broadcast %cst_15 : f32 to vector<96x16xf32>
    %23 = arith.minimumf %22, %21 : vector<96x16xf32>
    %24 = vector.shape_cast %23 : vector<96x16xf32> to vector<6x16x16xf32>
    %c1 = arith.constant 1 : index
    %c0_16 = arith.constant 0 : index
    %c0_17 = arith.constant 0 : index
    %25 = vector.load %arg10[%c1, %c0_16, %c0_17] : memref<8x16x16xf32, #tpu.memory_space<vmem>>, vector<6x16x16xf32>
    tpu.vector_store %arg10[%c1, %c0_16, %c0_17], %24 {strides = array<i32>} : memref<8x16x16xf32, #tpu.memory_space<vmem>>, vector<6x16x16xf32>,
    %c0_18 = arith.constant 0 : index
    %c0_19 = arith.constant 0 : index
    %26 = vector.load %arg5[%c0_18, %c0_19] : memref<9x16xf32, #tpu.memory_space<vmem>>, vector<9x16xf32>
    %cst_20 = arith.constant 0.000000e+00 : f32
    %27 = vector.broadcast %cst_20 : f32 to vector<4x16x16xf32>
    %cst_21 = arith.constant 0.000000e+00 : f32
    %28 = vector.broadcast %cst_21 : f32 to vector<4x16x16xf32>
    %cst_22 = arith.constant 0.000000e+00 : f32
    %29 = vector.broadcast %cst_22 : f32 to vector<4x16x16xf32>
    %c0_i32_23 = arith.constant 0 : i32
    %30 = arith.addi %6, %c0_i32_23 : i32
    %31 = arith.index_cast %30 : i32 to index
    %c0_24 = arith.constant 0 : index
    %c0_25 = arith.constant 0 : index
    %32 = vector.load %arg10[%31, %c0_24, %c0_25] : memref<8x16x16xf32, #tpu.memory_space<vmem>>, vector<4x16x16xf32>
    %33 = vector.extract_strided_slice %26 {offsets = [0, 0], sizes = [1, 16], strides = [1, 1]} : vector<9x16xf32> to vector<1x16xf32>
    %34 = vector.shape_cast %33 : vector<1x16xf32> to vector<16xf32>
    %35 = vector.shape_cast %34 : vector<16xf32> to vector<1x1x16xf32>
    %36 = vector.broadcast %35 : vector<1x1x16xf32> to vector<4x16x16xf32>
    %37 = arith.mulf %32, %36 : vector<4x16x16xf32>
    %38 = arith.addf %27, %37 : vector<4x16x16xf32>
    %39 = vector.extract_strided_slice %26 {offsets = [1, 0], sizes = [1, 16], strides = [1, 1]} : vector<9x16xf32> to vector<1x16xf32>
    %40 = vector.shape_cast %39 : vector<1x16xf32> to vector<16xf32>
    %41 = vector.shape_cast %40 : vector<16xf32> to vector<1x1x16xf32>
    %42 = vector.broadcast %41 : vector<1x1x16xf32> to vector<4x16x16xf32>
    %43 = arith.mulf %32, %42 : vector<4x16x16xf32>
    %44 = arith.addf %28, %43 : vector<4x16x16xf32>
    %45 = vector.extract_strided_slice %26 {offsets = [2, 0], sizes = [1, 16], strides = [1, 1]} : vector<9x16xf32> to vector<1x16xf32>
    %46 = vector.shape_cast %45 : vector<1x16xf32> to vector<16xf32>
    %47 = vector.shape_cast %46 : vector<16xf32> to vector<1x1x16xf32>
    %48 = vector.broadcast %47 : vector<1x1x16xf32> to vector<4x16x16xf32>
    %49 = arith.mulf %32, %48 : vector<4x16x16xf32>
    %50 = arith.addf %29, %49 : vector<4x16x16xf32>
    %c1_i32_26 = arith.constant 1 : i32
    %51 = arith.addi %6, %c1_i32_26 : i32
    %52 = arith.index_cast %51 : i32 to index
    %c0_27 = arith.constant 0 : index
    %c0_28 = arith.constant 0 : index
    %53 = vector.load %arg10[%52, %c0_27, %c0_28] : memref<8x16x16xf32, #tpu.memory_space<vmem>>, vector<4x16x16xf32>
    %54 = vector.extract_strided_slice %26 {offsets = [3, 0], sizes = [1, 16], strides = [1, 1]} : vector<9x16xf32> to vector<1x16xf32>
    %55 = vector.shape_cast %54 : vector<1x16xf32> to vector<16xf32>
    %56 = vector.shape_cast %55 : vector<16xf32> to vector<1x1x16xf32>
    %57 = vector.broadcast %56 : vector<1x1x16xf32> to vector<4x16x16xf32>
    %58 = arith.mulf %53, %57 : vector<4x16x16xf32>
    %59 = arith.addf %38, %58 : vector<4x16x16xf32>
    %60 = vector.extract_strided_slice %26 {offsets = [4, 0], sizes = [1, 16], strides = [1, 1]} : vector<9x16xf32> to vector<1x16xf32>
    %61 = vector.shape_cast %60 : vector<1x16xf32> to vector<16xf32>
    %62 = vector.shape_cast %61 : vector<16xf32> to vector<1x1x16xf32>
    %63 = vector.broadcast %62 : vector<1x1x16xf32> to vector<4x16x16xf32>
    %64 = arith.mulf %53, %63 : vector<4x16x16xf32>
    %65 = arith.addf %44, %64 : vector<4x16x16xf32>
    %66 = vector.extract_strided_slice %26 {offsets = [5, 0], sizes = [1, 16], strides = [1, 1]} : vector<9x16xf32> to vector<1x16xf32>
    %67 = vector.shape_cast %66 : vector<1x16xf32> to vector<16xf32>
    %68 = vector.shape_cast %67 : vector<16xf32> to vector<1x1x16xf32>
    %69 = vector.broadcast %68 : vector<1x1x16xf32> to vector<4x16x16xf32>
    %70 = arith.mulf %53, %69 : vector<4x16x16xf32>
    %71 = arith.addf %50, %70 : vector<4x16x16xf32>
    %c2_i32 = arith.constant 2 : i32
    %72 = arith.addi %6, %c2_i32 : i32
    %73 = arith.index_cast %72 : i32 to index
    %c0_29 = arith.constant 0 : index
    %c0_30 = arith.constant 0 : index
    %74 = vector.load %arg10[%73, %c0_29, %c0_30] : memref<8x16x16xf32, #tpu.memory_space<vmem>>, vector<4x16x16xf32>
    %75 = vector.extract_strided_slice %26 {offsets = [6, 0], sizes = [1, 16], strides = [1, 1]} : vector<9x16xf32> to vector<1x16xf32>
    %76 = vector.shape_cast %75 : vector<1x16xf32> to vector<16xf32>
    %77 = vector.shape_cast %76 : vector<16xf32> to vector<1x1x16xf32>
    %78 = vector.broadcast %77 : vector<1x1x16xf32> to vector<4x16x16xf32>
    %79 = arith.mulf %74, %78 : vector<4x16x16xf32>
    %80 = arith.addf %59, %79 : vector<4x16x16xf32>
    %81 = vector.extract_strided_slice %26 {offsets = [7, 0], sizes = [1, 16], strides = [1, 1]} : vector<9x16xf32> to vector<1x16xf32>
    %82 = vector.shape_cast %81 : vector<1x16xf32> to vector<16xf32>
    %83 = vector.shape_cast %82 : vector<16xf32> to vector<1x1x16xf32>
    %84 = vector.broadcast %83 : vector<1x1x16xf32> to vector<4x16x16xf32>
    %85 = arith.mulf %74, %84 : vector<4x16x16xf32>
    %86 = arith.addf %65, %85 : vector<4x16x16xf32>
    %87 = vector.extract_strided_slice %26 {offsets = [8, 0], sizes = [1, 16], strides = [1, 1]} : vector<9x16xf32> to vector<1x16xf32>
    %88 = vector.shape_cast %87 : vector<1x16xf32> to vector<16xf32>
    %89 = vector.shape_cast %88 : vector<16xf32> to vector<1x1x16xf32>
    %90 = vector.broadcast %89 : vector<1x1x16xf32> to vector<4x16x16xf32>
    %91 = arith.mulf %74, %90 : vector<4x16x16xf32>
    %92 = arith.addf %71, %91 : vector<4x16x16xf32>
    %93 = tpu.iota {dimensions = array<i32: 1>} : vector<1x16x16xi32>
    %c1_i32_31 = arith.constant 1 : i32
    %94 = vector.broadcast %c1_i32_31 : i32 to vector<1x16x16xi32>
    %95 = arith.cmpi sge, %93, %94 : vector<1x16x16xi32>
    %96 = arith.extui %95 : vector<1x16x16xi1> to vector<1x16x16xi32>
    %97 = arith.sitofp %96 : vector<1x16x16xi32> to vector<1x16x16xf32>
    %c14_i32 = arith.constant 14 : i32
    %98 = vector.broadcast %c14_i32 : i32 to vector<1x16x16xi32>
    %99 = arith.cmpi sle, %93, %98 : vector<1x16x16xi32>
    %100 = arith.extui %99 : vector<1x16x16xi1> to vector<1x16x16xi32>
    %101 = arith.sitofp %100 : vector<1x16x16xi32> to vector<1x16x16xf32>
    %c1_i32_32 = arith.constant 1 : i32
    %102 = tpu.dynamic_rotate %80 by %c1_i32_32 dim 1 : vector<4x16x16xf32>, i32 -> vector<4x16x16xf32>
    %103 = vector.broadcast %97 : vector<1x16x16xf32> to vector<4x16x16xf32>
    %104 = arith.mulf %102, %103 : vector<4x16x16xf32>
    %105 = arith.addf %86, %104 : vector<4x16x16xf32>
    %c15_i32 = arith.constant 15 : i32
    %106 = tpu.dynamic_rotate %92 by %c15_i32 dim 1 : vector<4x16x16xf32>, i32 -> vector<4x16x16xf32>
    %107 = vector.broadcast %101 : vector<1x16x16xf32> to vector<4x16x16xf32>
    %108 = arith.mulf %106, %107 : vector<4x16x16xf32>
    %109 = arith.addf %105, %108 : vector<4x16x16xf32>
    %c0_33 = arith.constant 0 : index
    %c0_34 = arith.constant 0 : index
    %110 = vector.load %arg6[%c0_33, %c0_34] : memref<1x16xf32, #tpu.memory_space<vmem>>, vector<1x16xf32>
    %111 = vector.shape_cast %110 : vector<1x16xf32> to vector<1x1x16xf32>
    %112 = vector.broadcast %111 : vector<1x1x16xf32> to vector<4x16x16xf32>
    %113 = arith.addf %109, %112 : vector<4x16x16xf32>
    %cst_35 = arith.constant 0.000000e+00 : f32
    %cst_36 = arith.constant 6.000000e+00 : f32
    %114 = vector.broadcast %cst_35 : f32 to vector<4x16x16xf32>
    %115 = arith.maximumf %114, %113 : vector<4x16x16xf32>
    %116 = vector.broadcast %cst_36 : f32 to vector<4x16x16xf32>
    %117 = arith.minimumf %116, %115 : vector<4x16x16xf32>
    %118 = vector.shape_cast %117 : vector<4x16x16xf32> to vector<64x16xf32>
    %119 = arith.truncf %118 : vector<64x16xf32> to vector<64x16xbf16>
    %c0_37 = arith.constant 0 : index
    %c0_38 = arith.constant 0 : index
    %120 = vector.load %arg7[%c0_37, %c0_38] : memref<16x8xbf16, #tpu.memory_space<vmem>>, vector<16x8xbf16>
    %cst_39 = arith.constant dense<0.000000e+00> : vector<64x8xf32>
    %121 = tpu.matmul %119, %120, %cst_39 {dimension_numbers = #tpu.dot_dimension_numbers<[1], [0], [0], [1], [0, 0, 1, 1], [], []>} : vector<64x16xbf16>, vector<16x8xbf16>, vector<64x8xf32> -> vector<64x8xf32>
    %c0_40 = arith.constant 0 : index
    %c0_41 = arith.constant 0 : index
    %122 = vector.load %arg8[%c0_40, %c0_41] : memref<1x8xf32, #tpu.memory_space<vmem>>, vector<1x8xf32>
    %123 = vector.broadcast %122 : vector<1x8xf32> to vector<64x8xf32>
    %124 = arith.addf %121, %123 : vector<64x8xf32>
    %c4_i32_42 = arith.constant 4 : i32
    %125 = arith.muli %arg1, %c4_i32_42 : i32
    %c0_43 = arith.constant 0 : index
    %126 = arith.index_cast %125 : i32 to index
    %c0_44 = arith.constant 0 : index
    %c0_45 = arith.constant 0 : index
    %127 = vector.load %arg2[%c0_43, %126, %c0_44, %c0_45] : memref<1x16x16x8xf32, #tpu.memory_space<vmem>>, vector<1x4x16x8xf32>
    %128 = vector.shape_cast %127 : vector<1x4x16x8xf32> to vector<4x16x8xf32>
    %129 = vector.shape_cast %128 : vector<4x16x8xf32> to vector<64x8xf32>
    %130 = arith.addf %124, %129 : vector<64x8xf32>
    %131 = vector.shape_cast %130 : vector<64x8xf32> to vector<4x16x8xf32>
    %c0_46 = arith.constant 0 : index
    %c0_47 = arith.constant 0 : index
    %c0_48 = arith.constant 0 : index
    %c0_49 = arith.constant 0 : index
    %132 = vector.load %arg9[%c0_46, %c0_47, %c0_48, %c0_49] : memref<1x4x16x8xf32, #tpu.memory_space<vmem>>, vector<1x4x16x8xf32>
    %133 = vector.shape_cast %132 : vector<1x4x16x8xf32> to vector<4x16x8xf32>
    %134 = vector.shape_cast %131 : vector<4x16x8xf32> to vector<1x4x16x8xf32>
    tpu.vector_store %arg9[%c0_46, %c0_47, %c0_48, %c0_49], %134 {strides = array<i32>} : memref<1x4x16x8xf32, #tpu.memory_space<vmem>>, vector<1x4x16x8xf32>,
    return
  }
  func.func @transform_0(%arg0: i32, %arg1: i32) -> (i32, i32, i32, i32) {
    %c0_i32 = arith.constant 0 : i32
    %c0_i32_0 = arith.constant 0 : i32
    %c0_i32_1 = arith.constant 0 : i32
    %c0_i32_2 = arith.constant 0 : i32
    return %arg0, %c0_i32, %c0_i32_0, %c0_i32_1 : i32, i32, i32, i32
  }
  func.func @transform_1(%arg0: i32, %arg1: i32) -> (i32, i32) {
    %c0_i32 = arith.constant 0 : i32
    %c0_i32_0 = arith.constant 0 : i32
    %c0_i32_1 = arith.constant 0 : i32
    return %c0_i32, %c0_i32_0 : i32, i32
  }
  func.func @transform_2(%arg0: i32, %arg1: i32) -> (i32, i32) {
    %c0_i32 = arith.constant 0 : i32
    %c0_i32_0 = arith.constant 0 : i32
    %c0_i32_1 = arith.constant 0 : i32
    return %c0_i32, %c0_i32_0 : i32, i32
  }
  func.func @transform_3(%arg0: i32, %arg1: i32) -> (i32, i32) {
    %c0_i32 = arith.constant 0 : i32
    %c0_i32_0 = arith.constant 0 : i32
    %c0_i32_1 = arith.constant 0 : i32
    return %c0_i32, %c0_i32_0 : i32, i32
  }
  func.func @transform_4(%arg0: i32, %arg1: i32) -> (i32, i32) {
    %c0_i32 = arith.constant 0 : i32
    %c0_i32_0 = arith.constant 0 : i32
    %c0_i32_1 = arith.constant 0 : i32
    return %c0_i32, %c0_i32_0 : i32, i32
  }
  func.func @transform_5(%arg0: i32, %arg1: i32) -> (i32, i32) {
    %c0_i32 = arith.constant 0 : i32
    %c0_i32_0 = arith.constant 0 : i32
    %c0_i32_1 = arith.constant 0 : i32
    return %c0_i32, %c0_i32_0 : i32, i32
  }
  func.func @transform_6(%arg0: i32, %arg1: i32) -> (i32, i32) {
    %c0_i32 = arith.constant 0 : i32
    %c0_i32_0 = arith.constant 0 : i32
    %c0_i32_1 = arith.constant 0 : i32
    return %c0_i32, %c0_i32_0 : i32, i32
  }
  func.func @transform_7(%arg0: i32, %arg1: i32) -> (i32, i32, i32, i32) {
    %c0_i32 = arith.constant 0 : i32
    %c0_i32_0 = arith.constant 0 : i32
    %c0_i32_1 = arith.constant 0 : i32
    return %arg0, %arg1, %c0_i32, %c0_i32_0 : i32, i32, i32, i32
  }
}

</mosaic_0001>

<llo_original>
// kernel: tpu_custom_call.1
$region0: #{tpu_custom_call.1}
  #allocation0 [shape = 'u32[]', space=smem, size = 0x4, offset = 0x4, fixed_abs, tag = 'smem constant byte address 0x4 - core index']
  #allocation1 [shape = 'u32[144,128]{1,0:T(1,128)}', space=vmem, size = 0x12000, scoped, tag = 'internal scratch']
  #allocation2 [shape = 'f32[8,16,16]{2,1,0:T(8,128)}', space=vmem, size = 0x10000, scoped, tag = 'scratch operand']
  %s0 = inlined_call_operand.vmem [shape: f32[2,16,16,8], index: 0, kind: input, shape index: {}]
  %s1 = inlined_call_operand.vmem [shape: bf16[8,16], index: 1, kind: input, shape index: {}]
  %s2 = inlined_call_operand.vmem [shape: f32[1,16], index: 2, kind: input, shape index: {}]
  %s3 = inlined_call_operand.vmem [shape: f32[9,16], index: 3, kind: input, shape index: {}]
  %s4 = inlined_call_operand.vmem [shape: f32[1,16], index: 4, kind: input, shape index: {}]
  %s5 = inlined_call_operand.vmem [shape: bf16[16,8], index: 5, kind: input, shape index: {}]
  %s6 = inlined_call_operand.vmem [shape: f32[1,8], index: 6, kind: input, shape index: {}]
  %s7 = inlined_call_operand.vmem [shape: f32[2,16,16,8], index: 7, kind: output, shape index: {}]
  %s8 = sld [smem:[#allocation0]]
  $region61: #{tpu_custom_call.1} parent=0
    _
  %s10 = ssub.s32 1, %s8
  %s11 = scalar_select 0, %s10, %s8
  loop: start=0, step=1, limit=10
  $region2: #{tpu_custom_call.1} parent=0 // loop_pre_header
    _
  $region3: #{tpu_custom_call.1} parent=0 // loop_header
    %s13 = sphi 0, %s17
    %p14 = scmp.ge.s32.totalorder %s13, 10
    %s20 = sphi 0, %s32
    %s21 = sphi 0, %s28
    %s22 = sphi 0, %s20
    %s23 = sphi 0, %s21
    %s24 = sphi 0, %s22
    %s25 = sphi 0, %s23
    %s35 = sphi 0, %s37
    %s38 = sphi 0, %s35
    %s39 = sphi 0, %s38
    %s55 = sphi 0, %s39
    %s59 = sphi 0, %s59
    %s61 = sphi 0, %s59
    %s62 = sphi 0, %s61
    %s76 = sphi 0, %s62
    %s80 = sphi 0, %s80
    %s82 = sphi 0, %s80
    %s83 = sphi 0, %s82
    %s97 = sphi 0, %s83
    %s101 = sphi 0, %s101
    %s103 = sphi 0, %s101
    %s104 = sphi 0, %s103
    %s118 = sphi 0, %s104
    %s122 = sphi 0, %s122
    %s124 = sphi 0, %s122
    %s125 = sphi 0, %s124
    %s139 = sphi 0, %s125
    %s143 = sphi 0, %s143
    %s145 = sphi 0, %s143
    %s146 = sphi 0, %s145
    %s160 = sphi 0, %s146
    %s164 = sphi 0, %s164
    %s166 = sphi 0, %s164
    %s167 = sphi 0, %s166
    %s181 = sphi 0, %s167
    %s189 = sphi 0, %s191
    %s192 = sphi 0, %s189
    %s193 = sphi 0, %s192
    %s209 = sphi 0, %s193
  $region4: #{tpu_custom_call.1} parent=0 // loop_header_branch
    %16 = sbr.rel (%p14) target = $region8
  $region5: #{tpu_custom_call.1} parent=0 // loop_body
    %s18 = ssub.s32 %s13, 1
    %s19 = ssub.s32 %s13, 2
    %s26 = sadd.s32 1, %s21
    %p27 = scmp.ge.s32.totalorder %s26, 4
    %s28 = scalar_select %p27, 0, %s26
    %s29 = sadd.s32 1, %s20
    %s30 = scalar_select %p27, %s29, %s20
    %p31 = scmp.ge.s32.totalorder %s30, 2
    %s32 = scalar_select %p31, 0, %s30
    %s33 = ssub.s32 %s20, %s32
    %p34 = scmp.eq.s32.totalorder %s33, 0
    %s36 = sadd.s32 %s35, 1
    %s37 = scalar_select %p34, %s35, %s36
    %p40 = pneg %p34
    %p41 = scmp.eq.s32.totalorder %s13, 7
    %p42 = por %p40, %p41
    %p43 = scmp.ne.s32.totalorder %s35, %s38
    %p44 = scmp.eq.s32.totalorder %s13, 0
    %p45 = por %p43, %p44
    %p46 = scmp.ne.s32.totalorder %s35, %s38
    %p47 = scmp.eq.s32.totalorder %s18, 7
    %p48 = por %p46, %p47
    %p49 = scmp.ne.s32.totalorder %s38, %s39
    %p50 = scmp.eq.s32.totalorder %s18, 0
    %p51 = por %p49, %p50
    %p52 = scmp.ne.s32.totalorder %s38, %s39
    %p53 = scmp.eq.s32.totalorder %s19, 7
    %p54 = por %p52, %p53
    %p56 = scmp.ne.s32.totalorder %s39, %s55
    %p57 = scmp.eq.s32.totalorder %s19, 0
    %p58 = por %p56, %p57
    %s60 = sadd.s32 %s59, 1
    %p63 = scmp.eq.s32.totalorder %s13, 7
    %p64 = scmp.ne.s32.totalorder %s59, %s61
    %p65 = scmp.eq.s32.totalorder %s13, 0
    %p66 = por %p64, %p65
    %p67 = scmp.ne.s32.totalorder %s59, %s61
    %p68 = scmp.eq.s32.totalorder %s18, 7
    %p69 = por %p67, %p68
    %p70 = scmp.ne.s32.totalorder %s61, %s62
    %p71 = scmp.eq.s32.totalorder %s18, 0
    %p72 = por %p70, %p71
    %p73 = scmp.ne.s32.totalorder %s61, %s62
    %p74 = scmp.eq.s32.totalorder %s19, 7
    %p75 = por %p73, %p74
    %p77 = scmp.ne.s32.totalorder %s62, %s76
    %p78 = scmp.eq.s32.totalorder %s19, 0
    %p79 = por %p77, %p78
    %s81 = sadd.s32 %s80, 1
    %p84 = scmp.eq.s32.totalorder %s13, 7
    %p85 = scmp.ne.s32.totalorder %s80, %s82
    %p86 = scmp.eq.s32.totalorder %s13, 0
    %p87 = por %p85, %p86
    %p88 = scmp.ne.s32.totalorder %s80, %s82
    %p89 = scmp.eq.s32.totalorder %s18, 7
    %p90 = por %p88, %p89
    %p91 = scmp.ne.s32.totalorder %s82, %s83
    %p92 = scmp.eq.s32.totalorder %s18, 0
    %p93 = por %p91, %p92
    %p94 = scmp.ne.s32.totalorder %s82, %s83
    %p95 = scmp.eq.s32.totalorder %s19, 7
    %p96 = por %p94, %p95
    %p98 = scmp.ne.s32.totalorder %s83, %s97
    %p99 = scmp.eq.s32.totalorder %s19, 0
    %p100 = por %p98, %p99
    %s102 = sadd.s32 %s101, 1
    %p105 = scmp.eq.s32.totalorder %s13, 7
    %p106 = scmp.ne.s32.totalorder %s101, %s103
    %p107 = scmp.eq.s32.totalorder %s13, 0
    %p108 = por %p106, %p107
    %p109 = scmp.ne.s32.totalorder %s101, %s103
    %p110 = scmp.eq.s32.totalorder %s18, 7
    %p111 = por %p109, %p110
    %p112 = scmp.ne.s32.totalorder %s103, %s104
    %p113 = scmp.eq.s32.totalorder %s18, 0
    %p114 = por %p112, %p113
    %p115 = scmp.ne.s32.totalorder %s103, %s104
    %p116 = scmp.eq.s32.totalorder %s19, 7
    %p117 = por %p115, %p116
    %p119 = scmp.ne.s32.totalorder %s104, %s118
    %p120 = scmp.eq.s32.totalorder %s19, 0
    %p121 = por %p119, %p120
    %s123 = sadd.s32 %s122, 1
    %p126 = scmp.eq.s32.totalorder %s13, 7
    %p127 = scmp.ne.s32.totalorder %s122, %s124
    %p128 = scmp.eq.s32.totalorder %s13, 0
    %p129 = por %p127, %p128
    %p130 = scmp.ne.s32.totalorder %s122, %s124
    %p131 = scmp.eq.s32.totalorder %s18, 7
    %p132 = por %p130, %p131
    %p133 = scmp.ne.s32.totalorder %s124, %s125
    %p134 = scmp.eq.s32.totalorder %s18, 0
    %p135 = por %p133, %p134
    %p136 = scmp.ne.s32.totalorder %s124, %s125
    %p137 = scmp.eq.s32.totalorder %s19, 7
    %p138 = por %p136, %p137
    %p140 = scmp.ne.s32.totalorder %s125, %s139
    %p141 = scmp.eq.s32.totalorder %s19, 0
    %p142 = por %p140, %p141
    %s144 = sadd.s32 %s143, 1
    %p147 = scmp.eq.s32.totalorder %s13, 7
    %p148 = scmp.ne.s32.totalorder %s143, %s145
    %p149 = scmp.eq.s32.totalorder %s13, 0
    %p150 = por %p148, %p149
    %p151 = scmp.ne.s32.totalorder %s143, %s145
    %p152 = scmp.eq.s32.totalorder %s18, 7
    %p153 = por %p151, %p152
    %p154 = scmp.ne.s32.totalorder %s145, %s146
    %p155 = scmp.eq.s32.totalorder %s18, 0
    %p156 = por %p154, %p155
    %p157 = scmp.ne.s32.totalorder %s145, %s146
    %p158 = scmp.eq.s32.totalorder %s19, 7
    %p159 = por %p157, %p158
    %p161 = scmp.ne.s32.totalorder %s146, %s160
    %p162 = scmp.eq.s32.totalorder %s19, 0
    %p163 = por %p161, %p162
    %s165 = sadd.s32 %s164, 1
    %p168 = scmp.eq.s32.totalorder %s13, 7
    %p169 = scmp.ne.s32.totalorder %s164, %s166
    %p170 = scmp.eq.s32.totalorder %s13, 0
    %p171 = por %p169, %p170
    %p172 = scmp.ne.s32.totalorder %s164, %s166
    %p173 = scmp.eq.s32.totalorder %s18, 7
    %p174 = por %p172, %p173
    %p175 = scmp.ne.s32.totalorder %s166, %s167
    %p176 = scmp.eq.s32.totalorder %s18, 0
    %p177 = por %p175, %p176
    %p178 = scmp.ne.s32.totalorder %s166, %s167
    %p179 = scmp.eq.s32.totalorder %s19, 7
    %p180 = por %p178, %p179
    %p182 = scmp.ne.s32.totalorder %s167, %s181
    %p183 = scmp.eq.s32.totalorder %s19, 0
    %p184 = por %p182, %p183
    %s185 = ssub.s32 %s20, %s32
    %s186 = ssub.s32 %s21, %s28
    %s187 = sor.u32 %s185, %s186
    %p188 = scmp.eq.s32.totalorder %s187, 0
    %s190 = sadd.s32 %s189, 1
    %s191 = scalar_select %p188, %s189, %s190
    %p194 = pneg %p188
    %p195 = scmp.eq.s32.totalorder %s13, 7
    %p196 = por %p194, %p195
    %p197 = scmp.ne.s32.totalorder %s189, %s192
    %p198 = scmp.eq.s32.totalorder %s13, 0
    %p199 = por %p197, %p198
    %p200 = scmp.ne.s32.totalorder %s189, %s192
    %p201 = scmp.eq.s32.totalorder %s18, 7
    %p202 = por %p200, %p201
    %p203 = scmp.ne.s32.totalorder %s192, %s193
    %p204 = scmp.eq.s32.totalorder %s18, 0
    %p205 = por %p203, %p204
    %p206 = scmp.ne.s32.totalorder %s192, %s193
    %p207 = scmp.eq.s32.totalorder %s19, 7
    %p208 = por %p206, %p207
    %p210 = scmp.ne.s32.totalorder %s193, %s209
    %p211 = scmp.eq.s32.totalorder %s19, 0
    %p212 = por %p210, %p211
    %p213 = scmp.le.s32.totalorder 1, %s13
    %p214 = scmp.lt.s32.totalorder %s13, 9
    %p215 = pnand %p213, %p214
    %p216 = pneg %p215
    // Predicated region
    $region9: #{tpu_custom_call.1} parent=5 // pred_check
      _
    $region10: #{tpu_custom_call.1} parent=5 // pred_check_branch
      %218 = sbr.rel (%p215) target = $region12
    $region11: #{tpu_custom_call.1} parent=5 // pred_region
      %s219 = ssub.s32 %s13, 1
      // Predicated region
      $region13: #{tpu_custom_call.1} parent=11 // pred_check
        %p220 = pneg %p72
      $region14: #{tpu_custom_call.1} parent=11 // pred_check_branch
        %222 = sbr.rel (%p220) target = $region16
      $region15: #{tpu_custom_call.1} parent=11 // pred_region
        _
      $region16: #{tpu_custom_call.1} parent=11 // pred_fallthru
        _
      // Predicated region
      $region17: #{tpu_custom_call.1} parent=11 // pred_check
        %p223 = pneg %p93
      $region18: #{tpu_custom_call.1} parent=11 // pred_check_branch
        %225 = sbr.rel (%p223) target = $region20
      $region19: #{tpu_custom_call.1} parent=11 // pred_region
        _
      $region20: #{tpu_custom_call.1} parent=11 // pred_fallthru
        _
      // Predicated region
      $region21: #{tpu_custom_call.1} parent=11 // pred_check
        %p226 = pneg %p114
      $region22: #{tpu_custom_call.1} parent=11 // pred_check_branch
        %228 = sbr.rel (%p226) target = $region24
      $region23: #{tpu_custom_call.1} parent=11 // pred_region
        _
      $region24: #{tpu_custom_call.1} parent=11 // pred_fallthru
        _
      // Predicated region
      $region25: #{tpu_custom_call.1} parent=11 // pred_check
        %p229 = pneg %p135
      $region26: #{tpu_custom_call.1} parent=11 // pred_check_branch
        %231 = sbr.rel (%p229) target = $region28
      $region27: #{tpu_custom_call.1} parent=11 // pred_region
        _
      $region28: #{tpu_custom_call.1} parent=11 // pred_fallthru
        _
      // Predicated region
      $region29: #{tpu_custom_call.1} parent=11 // pred_check
        %p232 = pneg %p156
      $region30: #{tpu_custom_call.1} parent=11 // pred_check_branch
        %234 = sbr.rel (%p232) target = $region32
      $region31: #{tpu_custom_call.1} parent=11 // pred_region
        _
      $region32: #{tpu_custom_call.1} parent=11 // pred_fallthru
        _
      // Predicated region
      $region33: #{tpu_custom_call.1} parent=11 // pred_check
        %p235 = pneg %p177
      $region34: #{tpu_custom_call.1} parent=11 // pred_check_branch
        %237 = sbr.rel (%p235) target = $region36
      $region35: #{tpu_custom_call.1} parent=11 // pred_region
        _
      $region36: #{tpu_custom_call.1} parent=11 // pred_fallthru
        _
    $region12: #{tpu_custom_call.1} parent=5 // pred_fallthru
      _
    %p238 = scmp.lt.s32.totalorder %s13, 8
    // Predicated region
    $region37: #{tpu_custom_call.1} parent=5 // pred_check
      %p239 = pneg %p238
    $region38: #{tpu_custom_call.1} parent=5 // pred_check_branch
      %241 = sbr.rel (%p239) target = $region40
    $region39: #{tpu_custom_call.1} parent=5 // pred_region
      // Predicated region
      $region41: #{tpu_custom_call.1} parent=39 // pred_check
        %p242 = pneg %p45
      $region42: #{tpu_custom_call.1} parent=39 // pred_check_branch
        %244 = sbr.rel (%p242) target = $region44
      $region43: #{tpu_custom_call.1} parent=39 // pred_region
        %p245 = scmp.lt.s32.totalorder %s20, 1
        %s246 = scalar_select %p245, %s20, 1
        %s247 = smul.addr %s246, 32
        %s248 = smul.addr %s247, 8
        %s249 = scalar_lea.vmem %s0, %s248
      $region44: #{tpu_custom_call.1} parent=39 // pred_fallthru
        _
    $region40: #{tpu_custom_call.1} parent=5 // pred_fallthru
      _
    %p250 = scmp.le.s32.totalorder 1, %s13
    %p251 = scmp.lt.s32.totalorder %s13, 9
    %p252 = pnand %p250, %p251
    %p253 = pneg %p252
    // Predicated region
    $region45: #{tpu_custom_call.1} parent=5 // pred_check
      _
    $region46: #{tpu_custom_call.1} parent=5 // pred_check_branch
      %255 = sbr.rel (%p252) target = $region48
    $region47: #{tpu_custom_call.1} parent=5 // pred_region
      %s256 = ssub.s32 %s13, 1
      %p257 = scmp.lt.s32.totalorder %s22, 1
      %s258 = scalar_select %p257, %s22, 1
      %s259 = smul.addr %s258, 32
      %s260 = smul.addr %s259, 8
      %s261 = scalar_lea.vmem %s0, %s260
      %p262 = pneg %p51
      %p263 = pneg %p48
      %p264 = pneg %p72
      %p265 = pneg %p69
      %p266 = pneg %p93
      %p267 = pneg %p90
      %p268 = pneg %p114
      %p269 = pneg %p111
      %p270 = pneg %p135
      %p271 = pneg %p132
      %p272 = pneg %p156
      %p273 = pneg %p153
      %p274 = pneg %p177
      %p275 = pneg %p174
      %p276 = pneg %p205
      %p277 = pneg %p202
      %s278 = smul.u32 4, %s23
      %p279 = scmp.lt.s32.totalorder %s22, 1
      %s280 = scalar_select %p279, %s22, 1
      %p281 = scmp.lt.s32.totalorder %s278, 15
      %s282 = scalar_select %p281, %s278, 15
      %s283 = smul.addr %s282, 2
      %s284 = smul.addr %s280, 32
      %s285 = sadd.s32 %s283, %s284
      %s286 = smul.addr %s285, 8
      %s287 = scalar_lea.vmem %s7, %s286
      %p288 = scmp.lt.s32.totalorder %s22, 1
      %s289 = scalar_select %p288, %s22, 1
      %s290 = smul.addr %s289, 32
      %s291 = smul.addr %s290, 8
      %s292 = scalar_lea.vmem %s0, %s291
      %s293 = smul.u32 4, %s23
      %p294 = scmp.lt.s32.totalorder %s22, 1
      %s295 = scalar_select %p294, %s22, 1
      %p296 = scmp.lt.s32.totalorder %s293, 15
      %s297 = scalar_select %p296, %s293, 15
      %s298 = smul.addr %s297, 2
      %s299 = smul.addr %s295, 32
      %s300 = sadd.s32 %s298, %s299
      %s301 = smul.addr %s300, 8
      %s302 = scalar_lea.vmem %s7, %s301
      %s303 = smul.u32 4, %s23
      %s305 = smul.u32 %s23, 4
      %s306 = ssub.s32 %s305, 1
      %p307 = scmp.gt.s32.totalorder %s306, 0
      %s308 = scalar_select %p307, %s306, 0
      %p309 = scmp.lt.s32.totalorder %s308, 10
      %s310 = scalar_select %p309, %s308, 10
      %s311 = ssub.s32 %s306, %s310
      %s312 = sadd.s32 %s311, 1
      %vm313 = vcmask 130048
      %314 = vst.msk [vmem:[#allocation2] sm:$0xff] %vm313, 0.0
      %315 = vst.msk [vmem:[#allocation2 + $0x8] sm:$0xff] %vm313, 0.0
      %s316 = scalar_lea.vmem [#allocation2], 112
      %317 = vst.msk [vmem:[%s316] sm:$0xff] %vm313, 0.0
      %318 = vst.msk [vmem:[%s316 + $0x8] sm:$0xff] %vm313, 0.0
      %s319 = smul.u32 %s310, 16
      %s320 = scalar_lea.vmem %s292, %s319
      %v321 = vld [vmem:[%s320] sm:$0xff]
      %v322 = vld [vmem:[%s320 + $0x8] sm:$0xff]
      %v323 = vld [vmem:[%s320 + $0x10] sm:$0xff]
      %v324 = vld [vmem:[%s320 + $0x18] sm:$0xff]
      %v325 = vld [vmem:[%s320 + $0x20] sm:$0xff]
      %v326 = vld [vmem:[%s320 + $0x28] sm:$0xff]
      %v327 = vld [vmem:[%s320 + $0x30] sm:$0xff]
      %v328 = vld [vmem:[%s320 + $0x38] sm:$0xff]
      %v329 = vld [vmem:[%s320 + $0x40] sm:$0xff]
      %v330 = vld [vmem:[%s320 + $0x48] sm:$0xff]
      %v331 = vld [vmem:[%s320 + $0x50] sm:$0xff]
      %v332 = vld [vmem:[%s320 + $0x58] sm:$0xff]
      %v333 = vpack.c.bf16 %v322, %v321
      %v334 = vpack.c.bf16 %v324, %v323
      %v335 = vpack.c.bf16 %v326, %v325
      %v336 = vpack.c.bf16 %v328, %v327
      %v337 = vpack.c.bf16 %v330, %v329
      %v338 = vpack.c.bf16 %v332, %v331
      %v339 = vld [vmem:[%s1] sm:$0xf]
      %v340 = vld [vmem:[%s2] sm:$0x1]
      %v342 = vlaneseq
      %v343 = vshrl.u32 %v342, 7
      %v344 = vsub.s32 0, %v343
      %v345 = vrot.slane %v340, %v344
      %vm347 = vcmask 64512
      %v349 = vsel %vm347, %v333, 0
      %v352 = vsel %vm347, %v334, 0
      %v355 = vsel %vm347, %v335, 0
      %v358 = vsel %vm347, %v336, 0
      %v361 = vsel %vm347, %v337, 0
      %v364 = vsel %vm347, %v338, 0
      %vm366 = vcmask 1043456
      %v368 = vsel %vm366, %v339, 0
      %370 = vmatprep.subr.bf16.mxu0 0
      %371 = vmatpush1.bf16.msra.mxu0 %v368
      %372 = vmatprep.subr.bf16.mxu0 0
      %373 = vmatpush1.bf16.msra.mxu0 0
      %374 = vmatprep.subr.bf16.mxu0 0
      %375 = vmatpush1.bf16.msra.mxu0 0
      %376 = vmatprep.subr.bf16.mxu0 0
      %377 = vmatpush1.bf16.msra.mxu0 0
      %378 = vmatprep.subr.bf16.mxu0 0
      %379 = vmatpush1.bf16.msra.mxu0 0
      %380 = vmatprep.subr.bf16.mxu0 0
      %381 = vmatpush1.bf16.msra.mxu0 0
      %382 = vmatprep.subr.bf16.mxu0 0
      %383 = vmatpush1.bf16.msra.mxu0 0
      %384 = vmatprep.subr.bf16.mxu0 0
      %385 = vmatpush1.bf16.msra.mxu0 0
      %386 = vmatprep.subr.bf16.mxu0 0
      %387 = vmatpush1.bf16.msra.mxu0 0
      %388 = vmatprep.subr.bf16.mxu0 0
      %389 = vmatpush1.bf16.msra.mxu0 0
      %390 = vmatprep.subr.bf16.mxu0 0
      %391 = vmatpush1.bf16.msra.mxu0 0
      %392 = vmatprep.subr.bf16.mxu0 0
      %393 = vmatpush1.bf16.msra.mxu0 0
      %394 = vmatprep.subr.bf16.mxu0 0
      %395 = vmatpush1.bf16.msra.mxu0 0
      %396 = vmatprep.subr.bf16.mxu0 0
      %397 = vmatpush1.bf16.msra.mxu0 0
      %398 = vmatprep.subr.bf16.mxu0 0
      %399 = vmatpush1.bf16.msra.mxu0 0
      %400 = vmatprep.subr.bf16.mxu0 0
      %401 = vmatpush1.bf16.msra.mxu0 0
      %402 = vmatprep.mubr.bf16.mxu0 0
      %403 = vmatmul.mubr.bf16.gmra.mrb[0].mxu0 %v349
      %v404 = vpop.f32.mrb[0].mxu0
      %v405 = vadd.f32 %v345, %v404
      %v406 = vpop.f32.mrb[0].mxu0
      %v407 = vpop.f32.mrb[0].mxu0
      %v408 = vadd.f32 %v345, %v407
      %v409 = vpop.f32.mrb[0].mxu0
      %410 = vmatprep.mubr.bf16.mxu0 0
      %411 = vmatmul.mubr.bf16.gmra.mrb[0].mxu0 %v352
      %v412 = vpop.f32.mrb[0].mxu0
      %v413 = vadd.f32 %v345, %v412
      %v414 = vpop.f32.mrb[0].mxu0
      %v415 = vpop.f32.mrb[0].mxu0
      %v416 = vadd.f32 %v345, %v415
      %v417 = vpop.f32.mrb[0].mxu0
      %418 = vmatprep.mubr.bf16.mxu0 0
      %419 = vmatmul.mubr.bf16.gmra.mrb[0].mxu0 %v355
      %v420 = vpop.f32.mrb[0].mxu0
      %v421 = vadd.f32 %v345, %v420
      %v422 = vpop.f32.mrb[0].mxu0
      %v423 = vpop.f32.mrb[0].mxu0
      %v424 = vadd.f32 %v345, %v423
      %v425 = vpop.f32.mrb[0].mxu0
      %426 = vmatprep.mubr.bf16.mxu0 0
      %427 = vmatmul.mubr.bf16.gmra.mrb[0].mxu0 %v358
      %v428 = vpop.f32.mrb[0].mxu0
      %v429 = vadd.f32 %v345, %v428
      %v430 = vpop.f32.mrb[0].mxu0
      %v431 = vpop.f32.mrb[0].mxu0
      %v432 = vadd.f32 %v345, %v431
      %v433 = vpop.f32.mrb[0].mxu0
      %434 = vmatprep.mubr.bf16.mxu0 0
      %435 = vmatmul.mubr.bf16.gmra.mrb[0].mxu0 %v361
      %v436 = vpop.f32.mrb[0].mxu0
      %v437 = vadd.f32 %v345, %v436
      %v438 = vpop.f32.mrb[0].mxu0
      %v439 = vpop.f32.mrb[0].mxu0
      %v440 = vadd.f32 %v345, %v439
      %v441 = vpop.f32.mrb[0].mxu0
      %442 = vmatprep.mubr.bf16.mxu0 0
      %443 = vmatmul.mubr.bf16.gmra.mrb[0].mxu0 %v364
      %v444 = vpop.f32.mrb[0].mxu0
      %v445 = vadd.f32 %v345, %v444
      %v446 = vpop.f32.mrb[0].mxu0
      %v447 = vpop.f32.mrb[0].mxu0
      %v448 = vadd.f32 %v345, %v447
      %v449 = vpop.f32.mrb[0].mxu0
      %450 = vdwg.mxu0
      %v451 = vmax.f32 %v405, 0.0
      %v452 = vmax.f32 %v408, 0.0
      %v453 = vmax.f32 %v413, 0.0
      %v454 = vmax.f32 %v416, 0.0
      %v455 = vmax.f32 %v421, 0.0
      %v456 = vmax.f32 %v424, 0.0
      %v457 = vmax.f32 %v429, 0.0
      %v458 = vmax.f32 %v432, 0.0
      %v459 = vmax.f32 %v437, 0.0
      %v460 = vmax.f32 %v440, 0.0
      %v461 = vmax.f32 %v445, 0.0
      %v462 = vmax.f32 %v448, 0.0
      %v463 = vmin.f32 %v451, 6.0
      %v464 = vmin.f32 %v452, 6.0
      %v465 = vmin.f32 %v453, 6.0
      %v466 = vmin.f32 %v454, 6.0
      %v467 = vmin.f32 %v455, 6.0
      %v468 = vmin.f32 %v456, 6.0
      %v469 = vmin.f32 %v457, 6.0
      %v470 = vmin.f32 %v458, 6.0
      %v471 = vmin.f32 %v459, 6.0
      %v472 = vmin.f32 %v460, 6.0
      %v473 = vmin.f32 %v461, 6.0
      %v474 = vmin.f32 %v462, 6.0
      %s475 = scalar_lea.vmem [#allocation2], 16
      %476 = vst.msk [vmem:[%s475] sm:$0xff] %vm313, %v463
      %477 = vst.msk [vmem:[%s475 + $0x8] sm:$0xff] %vm313, %v464
      %478 = vst.msk [vmem:[%s475 + $0x10] sm:$0xff] %vm313, %v465
      %479 = vst.msk [vmem:[%s475 + $0x18] sm:$0xff] %vm313, %v466
      %480 = vst.msk [vmem:[%s475 + $0x20] sm:$0xff] %vm313, %v467
      %481 = vst.msk [vmem:[%s475 + $0x28] sm:$0xff] %vm313, %v468
      %482 = vst.msk [vmem:[%s475 + $0x30] sm:$0xff] %vm313, %v469
      %483 = vst.msk [vmem:[%s475 + $0x38] sm:$0xff] %vm313, %v470
      %484 = vst.msk [vmem:[%s475 + $0x40] sm:$0xff] %vm313, %v471
      %485 = vst.msk [vmem:[%s475 + $0x48] sm:$0xff] %vm313, %v472
      %486 = vst.msk [vmem:[%s475 + $0x50] sm:$0xff] %vm313, %v473
      %487 = vst.msk [vmem:[%s475 + $0x58] sm:$0xff] %vm313, %v474
      %v488 = vld [vmem:[%s3] sm:$0xff]
      %v489 = vld [vmem:[%s3 + $0x8] sm:$0x1]
      %s490 = smul.u32 %s312, 16
      %s491 = scalar_lea.vmem [#allocation2], %s490
      %v492 = vld [vmem:[%s491] sm:$0xff]
      %v493 = vld [vmem:[%s491 + $0x8] sm:$0xff]
      %v494 = vld [vmem:[%s491 + $0x10] sm:$0xff]
      %v495 = vld [vmem:[%s491 + $0x18] sm:$0xff]
      %v496 = vld [vmem:[%s491 + $0x20] sm:$0xff]
      %v497 = vld [vmem:[%s491 + $0x28] sm:$0xff]
      %v498 = vld [vmem:[%s491 + $0x30] sm:$0xff]
      %v499 = vld [vmem:[%s491 + $0x38] sm:$0xff]
      %v500 = vlaneseq
      %v501 = vshrl.u32 %v500, 7
      %v502 = vsub.s32 0, %v501
      %v503 = vrot.slane %v488, %v502
      %v504 = vmul.f32 %v492, %v503
      %v505 = vmul.f32 %v493, %v503
      %v506 = vmul.f32 %v494, %v503
      %v507 = vmul.f32 %v495, %v503
      %v508 = vmul.f32 %v496, %v503
      %v509 = vmul.f32 %v497, %v503
      %v510 = vmul.f32 %v498, %v503
      %v511 = vmul.f32 %v499, %v503
      %v512 = vadd.f32 %v504, 0.0
      %v513 = vadd.f32 %v505, 0.0
      %v514 = vadd.f32 %v506, 0.0
      %v515 = vadd.f32 %v507, 0.0
      %v516 = vadd.f32 %v508, 0.0
      %v517 = vadd.f32 %v509, 0.0
      %v518 = vadd.f32 %v510, 0.0
      %v519 = vadd.f32 %v511, 0.0
      %v520 = vlaneseq
      %v521 = vshrl.u32 %v520, 7
      %v522 = vsub.s32 1, %v521
      %v523 = vrot.slane %v488, %v522
      %v524 = vmul.f32 %v492, %v523
      %v525 = vmul.f32 %v493, %v523
      %v526 = vmul.f32 %v494, %v523
      %v527 = vmul.f32 %v495, %v523
      %v528 = vmul.f32 %v496, %v523
      %v529 = vmul.f32 %v497, %v523
      %v530 = vmul.f32 %v498, %v523
      %v531 = vmul.f32 %v499, %v523
      %v532 = vadd.f32 %v524, 0.0
      %v533 = vadd.f32 %v525, 0.0
      %v534 = vadd.f32 %v526, 0.0
      %v535 = vadd.f32 %v527, 0.0
      %v536 = vadd.f32 %v528, 0.0
      %v537 = vadd.f32 %v529, 0.0
      %v538 = vadd.f32 %v530, 0.0
      %v539 = vadd.f32 %v531, 0.0
      %v540 = vlaneseq
      %v541 = vshrl.u32 %v540, 7
      %v542 = vsub.s32 2, %v541
      %v543 = vrot.slane %v488, %v542
      %v544 = vmul.f32 %v492, %v543
      %v545 = vmul.f32 %v493, %v543
      %v546 = vmul.f32 %v494, %v543
      %v547 = vmul.f32 %v495, %v543
      %v548 = vmul.f32 %v496, %v543
      %v549 = vmul.f32 %v497, %v543
      %v550 = vmul.f32 %v498, %v543
      %v551 = vmul.f32 %v499, %v543
      %v552 = vadd.f32 %v544, 0.0
      %v553 = vadd.f32 %v545, 0.0
      %v554 = vadd.f32 %v546, 0.0
      %v555 = vadd.f32 %v547, 0.0
      %v556 = vadd.f32 %v548, 0.0
      %v557 = vadd.f32 %v549, 0.0
      %v558 = vadd.f32 %v550, 0.0
      %v559 = vadd.f32 %v551, 0.0
      %s560 = sadd.s32 %s311, 2
      %s561 = smul.u32 %s560, 16
      %s562 = scalar_lea.vmem [#allocation2], %s561
      %v563 = vld [vmem:[%s562] sm:$0xff]
      %v564 = vld [vmem:[%s562 + $0x8] sm:$0xff]
      %v565 = vld [vmem:[%s562 + $0x10] sm:$0xff]
      %v566 = vld [vmem:[%s562 + $0x18] sm:$0xff]
      %v567 = vld [vmem:[%s562 + $0x20] sm:$0xff]
      %v568 = vld [vmem:[%s562 + $0x28] sm:$0xff]
      %v569 = vld [vmem:[%s562 + $0x30] sm:$0xff]
      %v570 = vld [vmem:[%s562 + $0x38] sm:$0xff]
      %v571 = vlaneseq
      %v572 = vshrl.u32 %v571, 7
      %v573 = vsub.s32 3, %v572
      %v574 = vrot.slane %v488, %v573
      %v575 = vmul.f32 %v563, %v574
      %v576 = vmul.f32 %v564, %v574
      %v577 = vmul.f32 %v565, %v574
      %v578 = vmul.f32 %v566, %v574
      %v579 = vmul.f32 %v567, %v574
      %v580 = vmul.f32 %v568, %v574
      %v581 = vmul.f32 %v569, %v574
      %v582 = vmul.f32 %v570, %v574
      %v583 = vadd.f32 %v512, %v575
      %v584 = vadd.f32 %v513, %v576
      %v585 = vadd.f32 %v514, %v577
      %v586 = vadd.f32 %v515, %v578
      %v587 = vadd.f32 %v516, %v579
      %v588 = vadd.f32 %v517, %v580
      %v589 = vadd.f32 %v518, %v581
      %v590 = vadd.f32 %v519, %v582
      %v591 = vlaneseq
      %v592 = vshrl.u32 %v591, 7
      %v593 = vsub.s32 4, %v592
      %v594 = vrot.slane %v488, %v593
      %v595 = vmul.f32 %v563, %v594
      %v596 = vmul.f32 %v564, %v594
      %v597 = vmul.f32 %v565, %v594
      %v598 = vmul.f32 %v566, %v594
      %v599 = vmul.f32 %v567, %v594
      %v600 = vmul.f32 %v568, %v594
      %v601 = vmul.f32 %v569, %v594
      %v602 = vmul.f32 %v570, %v594
      %v603 = vadd.f32 %v532, %v595
      %v604 = vadd.f32 %v533, %v596
      %v605 = vadd.f32 %v534, %v597
      %v606 = vadd.f32 %v535, %v598
      %v607 = vadd.f32 %v536, %v599
      %v608 = vadd.f32 %v537, %v600
      %v609 = vadd.f32 %v538, %v601
      %v610 = vadd.f32 %v539, %v602
      %v611 = vlaneseq
      %v612 = vshrl.u32 %v611, 7
      %v613 = vsub.s32 5, %v612
      %v614 = vrot.slane %v488, %v613
      %v615 = vmul.f32 %v563, %v614
      %v616 = vmul.f32 %v564, %v614
      %v617 = vmul.f32 %v565, %v614
      %v618 = vmul.f32 %v566, %v614
      %v619 = vmul.f32 %v567, %v614
      %v620 = vmul.f32 %v568, %v614
      %v621 = vmul.f32 %v569, %v614
      %v622 = vmul.f32 %v570, %v614
      %v623 = vadd.f32 %v552, %v615
      %v624 = vadd.f32 %v553, %v616
      %v625 = vadd.f32 %v554, %v617
      %v626 = vadd.f32 %v555, %v618
      %v627 = vadd.f32 %v556, %v619
      %v628 = vadd.f32 %v557, %v620
      %v629 = vadd.f32 %v558, %v621
      %v630 = vadd.f32 %v559, %v622
      %s631 = sadd.s32 %s311, 3
      %s632 = smul.u32 %s631, 16
      %s633 = scalar_lea.vmem [#allocation2], %s632
      %v634 = vld [vmem:[%s633] sm:$0xff]
      %v635 = vld [vmem:[%s633 + $0x8] sm:$0xff]
      %v636 = vld [vmem:[%s633 + $0x10] sm:$0xff]
      %v637 = vld [vmem:[%s633 + $0x18] sm:$0xff]
      %v638 = vld [vmem:[%s633 + $0x20] sm:$0xff]
      %v639 = vld [vmem:[%s633 + $0x28] sm:$0xff]
      %v640 = vld [vmem:[%s633 + $0x30] sm:$0xff]
      %v641 = vld [vmem:[%s633 + $0x38] sm:$0xff]
      %v642 = vlaneseq
      %v643 = vshrl.u32 %v642, 7
      %v644 = vsub.s32 6, %v643
      %v645 = vrot.slane %v488, %v644
      %v646 = vmul.f32 %v634, %v645
      %v647 = vmul.f32 %v635, %v645
      %v648 = vmul.f32 %v636, %v645
      %v649 = vmul.f32 %v637, %v645
      %v650 = vmul.f32 %v638, %v645
      %v651 = vmul.f32 %v639, %v645
      %v652 = vmul.f32 %v640, %v645
      %v653 = vmul.f32 %v641, %v645
      %v654 = vadd.f32 %v583, %v646
      %v655 = vadd.f32 %v584, %v647
      %v656 = vadd.f32 %v585, %v648
      %v657 = vadd.f32 %v586, %v649
      %v658 = vadd.f32 %v587, %v650
      %v659 = vadd.f32 %v588, %v651
      %v660 = vadd.f32 %v589, %v652
      %v661 = vadd.f32 %v590, %v653
      %v662 = vlaneseq
      %v663 = vshrl.u32 %v662, 7
      %v664 = vsub.s32 7, %v663
      %v665 = vrot.slane %v488, %v664
      %v666 = vmul.f32 %v634, %v665
      %v667 = vmul.f32 %v635, %v665
      %v668 = vmul.f32 %v636, %v665
      %v669 = vmul.f32 %v637, %v665
      %v670 = vmul.f32 %v638, %v665
      %v671 = vmul.f32 %v639, %v665
      %v672 = vmul.f32 %v640, %v665
      %v673 = vmul.f32 %v641, %v665
      %v674 = vadd.f32 %v603, %v666
      %v675 = vadd.f32 %v604, %v667
      %v676 = vadd.f32 %v605, %v668
      %v677 = vadd.f32 %v606, %v669
      %v678 = vadd.f32 %v607, %v670
      %v679 = vadd.f32 %v608, %v671
      %v680 = vadd.f32 %v609, %v672
      %v681 = vadd.f32 %v610, %v673
      %v682 = vlaneseq
      %v683 = vshrl.u32 %v682, 7
      %v684 = vsub.s32 0, %v683
      %v685 = vrot.slane %v489, %v684
      %v686 = vmul.f32 %v634, %v685
      %v687 = vmul.f32 %v635, %v685
      %v688 = vmul.f32 %v636, %v685
      %v689 = vmul.f32 %v637, %v685
      %v690 = vmul.f32 %v638, %v685
      %v691 = vmul.f32 %v639, %v685
      %v692 = vmul.f32 %v640, %v685
      %v693 = vmul.f32 %v641, %v685
      %v694 = vadd.f32 %v623, %v686
      %v695 = vadd.f32 %v624, %v687
      %v696 = vadd.f32 %v625, %v688
      %v697 = vadd.f32 %v626, %v689
      %v698 = vadd.f32 %v627, %v690
      %v699 = vadd.f32 %v628, %v691
      %v700 = vadd.f32 %v629, %v692
      %v701 = vadd.f32 %v630, %v693
      %v702 = vlaneseq
      %v703 = vshrl.u32 %v702, 7
      %v704 = vadd.s32 %v703, 8
      %vm705 = vcmp.ge.s32.totalorder %v703, 1
      %vm706 = vcmp.ge.s32.totalorder %v704, 1
      %v707 = vsel %vm705, 1, 0
      %v708 = vsel %vm706, 1, 0
      %v709 = vcvt.s32.f32 %v707
      %v710 = vcvt.s32.f32 %v708
      %vm711 = vcmp.le.s32.totalorder %v703, 14
      %vm712 = vcmp.le.s32.totalorder %v704, 14
      %v713 = vsel %vm711, 1, 0
      %v714 = vsel %vm712, 1, 0
      %v715 = vcvt.s32.f32 %v713
      %v716 = vcvt.s32.f32 %v714
      %v717 = vrot.slane %v654, 7
      %v718 = vrot.slane %v656, 7
      %v719 = vrot.slane %v658, 7
      %v720 = vrot.slane %v660, 7
      %v721 = vrot.slane %v655, 7
      %v722 = vrot.slane %v657, 7
      %v723 = vrot.slane %v659, 7
      %v724 = vrot.slane %v661, 7
      %vm725 = vcmp.lt.s32.totalorder %v703, 1
      %v726 = vsel %vm725, %v717, %v721
      %v727 = vsel %vm725, %v718, %v722
      %v728 = vsel %vm725, %v719, %v723
      %v729 = vsel %vm725, %v720, %v724
      %v730 = vsel %vm725, %v721, %v717
      %v731 = vsel %vm725, %v722, %v718
      %v732 = vsel %vm725, %v723, %v719
      %v733 = vsel %vm725, %v724, %v720
      %v734 = vmul.f32 %v730, %v709
      %v735 = vmul.f32 %v726, %v710
      %v736 = vmul.f32 %v731, %v709
      %v737 = vmul.f32 %v727, %v710
      %v738 = vmul.f32 %v732, %v709
      %v739 = vmul.f32 %v728, %v710
      %v740 = vmul.f32 %v733, %v709
      %v741 = vmul.f32 %v729, %v710
      %v742 = vadd.f32 %v674, %v734
      %v743 = vadd.f32 %v675, %v735
      %v744 = vadd.f32 %v676, %v736
      %v745 = vadd.f32 %v677, %v737
      %v746 = vadd.f32 %v678, %v738
      %v747 = vadd.f32 %v679, %v739
      %v748 = vadd.f32 %v680, %v740
      %v749 = vadd.f32 %v681, %v741
      %v750 = vrot.slane %v694, 1
      %v751 = vrot.slane %v696, 1
      %v752 = vrot.slane %v698, 1
      %v753 = vrot.slane %v700, 1
      %v754 = vrot.slane %v695, 1
      %v755 = vrot.slane %v697, 1
      %v756 = vrot.slane %v699, 1
      %v757 = vrot.slane %v701, 1
      %vm758 = vcmp.lt.s32.totalorder %v703, 7
      %v759 = vsel %vm758, %v750, %v754
      %v760 = vsel %vm758, %v751, %v755
      %v761 = vsel %vm758, %v752, %v756
      %v762 = vsel %vm758, %v753, %v757
      %v763 = vsel %vm758, %v754, %v750
      %v764 = vsel %vm758, %v755, %v751
      %v765 = vsel %vm758, %v756, %v752
      %v766 = vsel %vm758, %v757, %v753
      %v767 = vmul.f32 %v759, %v715
      %v768 = vmul.f32 %v763, %v716
      %v769 = vmul.f32 %v760, %v715
      %v770 = vmul.f32 %v764, %v716
      %v771 = vmul.f32 %v761, %v715
      %v772 = vmul.f32 %v765, %v716
      %v773 = vmul.f32 %v762, %v715
      %v774 = vmul.f32 %v766, %v716
      %v775 = vadd.f32 %v742, %v767
      %v776 = vadd.f32 %v743, %v768
      %v777 = vadd.f32 %v744, %v769
      %v778 = vadd.f32 %v745, %v770
      %v779 = vadd.f32 %v746, %v771
      %v780 = vadd.f32 %v747, %v772
      %v781 = vadd.f32 %v748, %v773
      %v782 = vadd.f32 %v749, %v774
      %v783 = vld [vmem:[%s4] sm:$0x1]
      %v785 = vlaneseq
      %v786 = vshrl.u32 %v785, 7
      %v787 = vsub.s32 0, %v786
      %v788 = vrot.slane %v783, %v787
      %v790 = vadd.f32 %v775, %v788
      %v791 = vadd.f32 %v776, %v788
      %v792 = vadd.f32 %v777, %v788
      %v793 = vadd.f32 %v778, %v788
      %v794 = vadd.f32 %v779, %v788
      %v795 = vadd.f32 %v780, %v788
      %v796 = vadd.f32 %v781, %v788
      %v797 = vadd.f32 %v782, %v788
      %v798 = vmax.f32 %v790, 0.0
      %v799 = vmax.f32 %v791, 0.0
      %v800 = vmax.f32 %v792, 0.0
      %v801 = vmax.f32 %v793, 0.0
      %v802 = vmax.f32 %v794, 0.0
      %v803 = vmax.f32 %v795, 0.0
      %v804 = vmax.f32 %v796, 0.0
      %v805 = vmax.f32 %v797, 0.0
      %v806 = vmin.f32 %v798, 6.0
      %v807 = vmin.f32 %v799, 6.0
      %v808 = vmin.f32 %v800, 6.0
      %v809 = vmin.f32 %v801, 6.0
      %v810 = vmin.f32 %v802, 6.0
      %v811 = vmin.f32 %v803, 6.0
      %v812 = vmin.f32 %v804, 6.0
      %v813 = vmin.f32 %v805, 6.0
      %v814 = vpack.c.bf16 %v807, %v806
      %v815 = vpack.c.bf16 %v809, %v808
      %v816 = vpack.c.bf16 %v811, %v810
      %v817 = vpack.c.bf16 %v813, %v812
      %v818 = vld [vmem:[%s5] sm:$0xf]
      %v819 = vld [vmem:[%s5 + $0x4] sm:$0xf]
      %v820 = vld [vmem:[%s6] sm:$0x1]
      %v822 = vlaneseq
      %v823 = vshrl.u32 %v822, 7
      %v824 = vsub.s32 0, %v823
      %v825 = vrot.slane %v820, %v824
      %v829 = vunpack.c.l.b16 %v818
      %v830 = vunpack.c.l.b16 %v819
      %v831 = vpack.c.b16 %v830, %v829
      %v834 = vsel %vm313, %v814, 0
      %v837 = vsel %vm313, %v815, 0
      %v840 = vsel %vm313, %v816, 0
      %v843 = vsel %vm313, %v817, 0
      %845 = vmatprep.subr.bf16.mxu0 0
      %846 = vmatpush1.bf16.msra.mxu0 %v831
      %847 = vmatprep.subr.bf16.mxu0 0
      %848 = vmatpush1.bf16.msra.mxu0 0
      %849 = vmatprep.subr.bf16.mxu0 0
      %850 = vmatpush1.bf16.msra.mxu0 0
      %851 = vmatprep.subr.bf16.mxu0 0
      %852 = vmatpush1.bf16.msra.mxu0 0
      %853 = vmatprep.subr.bf16.mxu0 0
      %854 = vmatpush1.bf16.msra.mxu0 0
      %855 = vmatprep.subr.bf16.mxu0 0
      %856 = vmatpush1.bf16.msra.mxu0 0
      %857 = vmatprep.subr.bf16.mxu0 0
      %858 = vmatpush1.bf16.msra.mxu0 0
      %859 = vmatprep.subr.bf16.mxu0 0
      %860 = vmatpush1.bf16.msra.mxu0 0
      %861 = vmatprep.subr.bf16.mxu0 0
      %862 = vmatpush1.bf16.msra.mxu0 0
      %863 = vmatprep.subr.bf16.mxu0 0
      %864 = vmatpush1.bf16.msra.mxu0 0
      %865 = vmatprep.subr.bf16.mxu0 0
      %866 = vmatpush1.bf16.msra.mxu0 0
      %867 = vmatprep.subr.bf16.mxu0 0
      %868 = vmatpush1.bf16.msra.mxu0 0
      %869 = vmatprep.subr.bf16.mxu0 0
      %870 = vmatpush1.bf16.msra.mxu0 0
      %871 = vmatprep.subr.bf16.mxu0 0
      %872 = vmatpush1.bf16.msra.mxu0 0
      %873 = vmatprep.subr.bf16.mxu0 0
      %874 = vmatpush1.bf16.msra.mxu0 0
      %875 = vmatprep.subr.bf16.mxu0 0
      %876 = vmatpush1.bf16.msra.mxu0 0
      %877 = vmatprep.mubr.bf16.mxu0 0
      %878 = vmatmul.mubr.bf16.gmra.mrb[0].mxu0 %v834
      %v879 = vpop.f32.mrb[0].mxu0
      %v880 = vadd.f32 %v825, %v879
      %v881 = vpop.f32.mrb[0].mxu0
      %v882 = vpop.f32.mrb[0].mxu0
      %v883 = vadd.f32 %v825, %v882
      %v884 = vpop.f32.mrb[0].mxu0
      %885 = vmatprep.mubr.bf16.mxu0 0
      %886 = vmatmul.mubr.bf16.gmra.mrb[0].mxu0 %v837
      %v887 = vpop.f32.mrb[0].mxu0
      %v888 = vadd.f32 %v825, %v887
      %v889 = vpop.f32.mrb[0].mxu0
      %v890 = vpop.f32.mrb[0].mxu0
      %v891 = vadd.f32 %v825, %v890
      %v892 = vpop.f32.mrb[0].mxu0
      %893 = vmatprep.mubr.bf16.mxu0 0
      %894 = vmatmul.mubr.bf16.gmra.mrb[0].mxu0 %v840
      %v895 = vpop.f32.mrb[0].mxu0
      %v896 = vadd.f32 %v825, %v895
      %v897 = vpop.f32.mrb[0].mxu0
      %v898 = vpop.f32.mrb[0].mxu0
      %v899 = vadd.f32 %v825, %v898
      %v900 = vpop.f32.mrb[0].mxu0
      %901 = vmatprep.mubr.bf16.mxu0 0
      %902 = vmatmul.mubr.bf16.gmra.mrb[0].mxu0 %v843
      %v903 = vpop.f32.mrb[0].mxu0
      %v904 = vadd.f32 %v825, %v903
      %v905 = vpop.f32.mrb[0].mxu0
      %v906 = vpop.f32.mrb[0].mxu0
      %v907 = vadd.f32 %v825, %v906
      %v908 = vpop.f32.mrb[0].mxu0
      %909 = vdwg.mxu0
      %s910 = smul.u32 %s305, 16
      %s911 = scalar_lea.vmem %s292, %s910
      %v912 = vld [vmem:[%s911] sm:$0xff]
      %v913 = vld [vmem:[%s911 + $0x8] sm:$0xff]
      %v914 = vld [vmem:[%s911 + $0x10] sm:$0xff]
      %v915 = vld [vmem:[%s911 + $0x18] sm:$0xff]
      %v916 = vld [vmem:[%s911 + $0x20] sm:$0xff]
      %v917 = vld [vmem:[%s911 + $0x28] sm:$0xff]
      %v918 = vld [vmem:[%s911 + $0x30] sm:$0xff]
      %v919 = vld [vmem:[%s911 + $0x38] sm:$0xff]
      %v920 = vadd.f32 %v880, %v912
      %v921 = vadd.f32 %v883, %v913
      %v922 = vadd.f32 %v888, %v914
      %v923 = vadd.f32 %v891, %v915
      %v924 = vadd.f32 %v896, %v916
      %v925 = vadd.f32 %v899, %v917
      %v926 = vadd.f32 %v904, %v918
      %v927 = vadd.f32 %v907, %v919
      %928 = vst.msk [vmem:[%s302] sm:$0xff] %vm347, %v920
      %929 = vst.msk [vmem:[%s302 + $0x8] sm:$0xff] %vm347, %v921
      %930 = vst.msk [vmem:[%s302 + $0x10] sm:$0xff] %vm347, %v922
      %931 = vst.msk [vmem:[%s302 + $0x18] sm:$0xff] %vm347, %v923
      %932 = vst.msk [vmem:[%s302 + $0x20] sm:$0xff] %vm347, %v924
      %933 = vst.msk [vmem:[%s302 + $0x28] sm:$0xff] %vm347, %v925
      %934 = vst.msk [vmem:[%s302 + $0x30] sm:$0xff] %vm347, %v926
      %935 = vst.msk [vmem:[%s302 + $0x38] sm:$0xff] %vm347, %v927
      %s936 = smul.u32 4, %s23
      %p937 = scmp.lt.s32.totalorder %s22, 1
      %s938 = scalar_select %p937, %s22, 1
      %p939 = scmp.lt.s32.totalorder %s936, 15
      %s940 = scalar_select %p939, %s936, 15
      %s941 = smul.addr %s940, 2
      %s942 = smul.addr %s938, 32
      %s943 = sadd.s32 %s941, %s942
      %s944 = smul.addr %s943, 8
      %s945 = scalar_lea.vmem %s7, %s944
      // Predicated region
      $region49: #{tpu_custom_call.1} parent=47 // pred_check
        %p946 = pneg %p202
      $region50: #{tpu_custom_call.1} parent=47 // pred_check_branch
        %948 = sbr.rel (%p946) target = $region52
      $region51: #{tpu_custom_call.1} parent=47 // pred_region
        %s949 = smul.u32 4, %s23
      $region52: #{tpu_custom_call.1} parent=47 // pred_fallthru
        _
    $region48: #{tpu_custom_call.1} parent=5 // pred_fallthru
      _
    %p950 = scmp.le.s32.totalorder 2, %s13
    // Predicated region
    $region53: #{tpu_custom_call.1} parent=5 // pred_check
      %p951 = pneg %p950
    $region54: #{tpu_custom_call.1} parent=5 // pred_check_branch
      %953 = sbr.rel (%p951) target = $region56
    $region55: #{tpu_custom_call.1} parent=5 // pred_region
      %s954 = ssub.s32 %s13, 2
      // Predicated region
      $region57: #{tpu_custom_call.1} parent=55 // pred_check
        %p955 = pneg %p208
      $region58: #{tpu_custom_call.1} parent=55 // pred_check_branch
        %957 = sbr.rel (%p955) target = $region60
      $region59: #{tpu_custom_call.1} parent=55 // pred_region
        %s958 = smul.u32 4, %s25
        %p959 = scmp.lt.s32.totalorder %s24, 1
        %s960 = scalar_select %p959, %s24, 1
        %p961 = scmp.lt.s32.totalorder %s958, 15
        %s962 = scalar_select %p961, %s958, 15
        %s963 = smul.addr %s962, 2
        %s964 = smul.addr %s960, 32
        %s965 = sadd.s32 %s963, %s964
        %s966 = smul.addr %s965, 8
        %s967 = scalar_lea.vmem %s7, %s966
      $region60: #{tpu_custom_call.1} parent=55 // pred_fallthru
        _
    $region56: #{tpu_custom_call.1} parent=5 // pred_fallthru
      _
  $region6: #{tpu_custom_call.1} parent=0 // loop_footer
    %s17 = sadd.s32 1, %s13
  $region7: #{tpu_custom_call.1} parent=0 // loop_footer_branch
    %12 = sbr.rel target = $region3
  $region8: #{tpu_custom_call.1} parent=0 // loop_exit
    _

</llo_original>
